<compile_context>
chip_gen: v7x
topology: tpu7x:2x2x1
jax: 0.10.0
libtpu: 0.0.40
codegen_flags: <defaults>
</compile_context>

<pallas_src>
import jax
import jax.numpy as jnp
from jax.experimental import pallas as pl
from jax.experimental.pallas import tpu as pltpu


def _multi_hardtanh_kernel(x_ref, minv_ref, maxv_ref, o_ref):
    # minv_ref / maxv_ref are (TILE_R, 1) f32 column vectors; broadcast clamp.
    mn = minv_ref[...].astype(x_ref.dtype)
    mx = maxv_ref[...].astype(x_ref.dtype)
    # hardtanh(x, mn, mx) == clamp(x, mn, mx)
    o_ref[...] = jnp.minimum(jnp.maximum(x_ref[...], mn), mx)


def multi_hardtanh(x, tanh_settings, *, target_tile_bytes=4 * 1024 * 1024):
    """x: (N, C, H, W) array; tanh_settings: list of (minval, maxval) per channel."""
    N, C, H, W = x.shape
    assert C == len(tanh_settings), "number of channels must match tanh_settings"

    R = N * C          # rows of the flattened view
    L = H * W          # lane-dense last dim
    itemsize = jnp.dtype(x.dtype).itemsize

    # Per-row (flattened (n, c)) min/max column vectors. Kept in float32 for
    # portability (bf16/int8 activations) and cast inside the kernel.
    minvals = jnp.asarray([s[0] for s in tanh_settings], dtype=jnp.float32)
    maxvals = jnp.asarray([s[1] for s in tanh_settings], dtype=jnp.float32)
    minv_rows = jnp.tile(minvals, N).reshape(R, 1)   # row r -> channel r % C
    maxv_rows = jnp.tile(maxvals, N).reshape(R, 1)

    # Row-major reshape is free; lane dim becomes H*W.
    x2 = x.reshape(R, L)

    # Pick the row-tile: aim for ~4 MiB blocks (safe on v7x's 64 MiB VMEM with
    # double-buffered in+out), rounded to a multiple of 8 sublanes. A block
    # equal to the full row extent is always legal.
    rows_for_target = max(1, target_tile_bytes // (L * itemsize))
    tile_r = (rows_for_target // 8) * 8
    if tile_r < 8:
        tile_r = 8
    if tile_r >= R:
        tile_r = R
    grid = (pl.cdiv(R, tile_r),)

    out2 = pl.pallas_call(
        _multi_hardtanh_kernel,
        out_shape=jax.ShapeDtypeStruct((R, L), x.dtype),
        grid=grid,
        in_specs=[
            pl.BlockSpec((tile_r, L), lambda i: (i, 0)),
            pl.BlockSpec((tile_r, 1), lambda i: (i, 0)),
            pl.BlockSpec((tile_r, 1), lambda i: (i, 0)),
        ],
        out_specs=pl.BlockSpec((tile_r, L), lambda i: (i, 0)),
        compiler_params=pltpu.CompilerParams(
            # Pure elementwise op, no reduction: every axis is parallel so
            # v7x's two TensorCores can both be used.
            dimension_semantics=("parallel",),
            # Explicit budget: 2 arrays x 2 buffers x <=4 MiB tiles fits easily.
            vmem_limit_bytes=32 * 1024 * 1024,
        ),
    )(x2, minv_rows, maxv_rows)

    return out2.reshape(N, C, H, W)


if __name__ == "__main__":
    # Deterministic example: batch=2, channels=4, spatial=16x16
    key = jax.random.PRNGKey(0)
    N, C, H, W = 2, 4, 16, 16
    x = jax.random.normal(key, (N, C, H, W), dtype=jnp.float32) * 2.0

    # per-channel (minval, maxval) settings, as in the module's __init__
    tanh_settings = [(-1.0, 1.0), (-2.0, 2.0), (0.0, 1.0), (-0.5, 0.5)]

    out = multi_hardtanh(x, tanh_settings)
    out = jax.block_until_ready(out)

    # reference check in plain JAX
    refs = [jnp.clip(x[:, i, :, :], mn, mx) for i, (mn, mx) in enumerate(tanh_settings)]
    ref = jnp.stack(refs, axis=1)
    assert jnp.allclose(out, ref), "mismatch vs reference"

    print("KERNEL_OK")
</pallas_src>

<mosaic_0001>
module attributes {stable_mosaic.version = 11 : i64} {
  func.func @_multi_hardtanh_kernel(%arg0: i32, %arg1: memref<8x256xf32, #tpu.memory_space<vmem>>, %arg2: memref<8x1xf32, #tpu.memory_space<vmem>>, %arg3: memref<8x1xf32, #tpu.memory_space<vmem>>, %arg4: memref<8x256xf32, #tpu.memory_space<vmem>>) attributes {dimension_semantics = [#tpu.dimension_semantics<parallel>], iteration_bounds = array<i64: 1>, scalar_prefetch = 0 : i64, scratch_operands = 0 : i64, tpu.core_type = #tpu.core_type<tc>, window_params = [{transform_indices = @transform_0, window_bounds = array<i64: 8, 256>}, {transform_indices = @transform_1, window_bounds = array<i64: 8, 1>}, {transform_indices = @transform_2, window_bounds = array<i64: 8, 1>}, {transform_indices = @transform_3, window_bounds = array<i64: 8, 256>}]} {
    %c0 = arith.constant 0 : index
    %c0_0 = arith.constant 0 : index
    %0 = vector.load %arg2[%c0, %c0_0] : memref<8x1xf32, #tpu.memory_space<vmem>>, vector<8x1xf32>
    %c0_1 = arith.constant 0 : index
    %c0_2 = arith.constant 0 : index
    %1 = vector.load %arg3[%c0_1, %c0_2] : memref<8x1xf32, #tpu.memory_space<vmem>>, vector<8x1xf32>
    %c0_3 = arith.constant 0 : index
    %c0_4 = arith.constant 0 : index
    %2 = vector.load %arg1[%c0_3, %c0_4] : memref<8x256xf32, #tpu.memory_space<vmem>>, vector<8x256xf32>
    %3 = vector.broadcast %0 : vector<8x1xf32> to vector<8x256xf32>
    %4 = arith.maximumf %2, %3 : vector<8x256xf32>
    %5 = vector.broadcast %1 : vector<8x1xf32> to vector<8x256xf32>
    %6 = arith.minimumf %4, %5 : vector<8x256xf32>
    %c0_5 = arith.constant 0 : index
    %c0_6 = arith.constant 0 : index
    %7 = vector.load %arg4[%c0_5, %c0_6] : memref<8x256xf32, #tpu.memory_space<vmem>>, vector<8x256xf32>
    tpu.vector_store %arg4[%c0_5, %c0_6], %6 {strides = array<i32>} : memref<8x256xf32, #tpu.memory_space<vmem>>, vector<8x256xf32>,
    return
  }
  func.func @transform_0(%arg0: i32) -> (i32, i32) {
    %c0_i32 = arith.constant 0 : i32
    %c0_i32_0 = arith.constant 0 : i32
    return %arg0, %c0_i32 : i32, i32
  }
  func.func @transform_1(%arg0: i32) -> (i32, i32) {
    %c0_i32 = arith.constant 0 : i32
    %c0_i32_0 = arith.constant 0 : i32
    return %arg0, %c0_i32 : i32, i32
  }
  func.func @transform_2(%arg0: i32) -> (i32, i32) {
    %c0_i32 = arith.constant 0 : i32
    %c0_i32_0 = arith.constant 0 : i32
    return %arg0, %c0_i32 : i32, i32
  }
  func.func @transform_3(%arg0: i32) -> (i32, i32) {
    %c0_i32 = arith.constant 0 : i32
    %c0_i32_0 = arith.constant 0 : i32
    return %arg0, %c0_i32 : i32, i32
  }
}

</mosaic_0001>

<llo_original>
// kernel: tpu_custom_call.1
$region0: #{tpu_custom_call.1}
  #allocation0 [shape = 'u32[]', space=smem, size = 0x4, offset = 0x4, fixed_abs, tag = 'smem constant byte address 0x4 - core index']
  #allocation1 [shape = 'u32[144,128]{1,0:T(1,128)}', space=vmem, size = 0x12000, scoped, tag = 'internal scratch']
  %s0 = inlined_call_operand.vmem [shape: f32[8,256], index: 0, kind: input, shape index: {}]
  %s1 = inlined_call_operand.vmem [shape: f32[8,1], index: 1, kind: input, shape index: {}]
  %s2 = inlined_call_operand.vmem [shape: f32[8,1], index: 2, kind: input, shape index: {}]
  %s3 = inlined_call_operand.hbm [shape: f32[8,256], index: 3, kind: output, shape index: {}]
  %s4 = sld [smem:[#allocation0]]
  $region22: #{tpu_custom_call.1} parent=0
    _
  %s6 = ssub.s32 1, %s4
  %s7 = scalar_select 0, %s6, %s4
  $region1: #{tpu_custom_call.1} parent=0
    #allocation2 [shape = 'u8[8192]{0}', space=vmem, size = 0x2000, scoped, tag = 'output window, operand 0, single buffered']
    #allocation3 [shape = 's32[1]{0}', space=sflag, size = 0x4, scoped, tag = 'scoped memory for tpu_custom_call.1']
    %8 = vsyncpa [#allocation3], 0
    // Predicated region
    $region2: #{tpu_custom_call.1} parent=1 // pred_check
      _
    $region3: #{tpu_custom_call.1} parent=1 // pred_check_branch
      %10 = sbr.rel (0) target = $region5
    $region4: #{tpu_custom_call.1} parent=1 // pred_region
      _
    $region5: #{tpu_custom_call.1} parent=1 // pred_fallthru
      _
    // Predicated region
    $region6: #{tpu_custom_call.1} parent=1 // pred_check
      _
    $region7: #{tpu_custom_call.1} parent=1 // pred_check_branch
      %12 = sbr.rel (0) target = $region9
    $region8: #{tpu_custom_call.1} parent=1 // pred_region
      _
    $region9: #{tpu_custom_call.1} parent=1 // pred_fallthru
      _
    // Predicated region
    $region10: #{tpu_custom_call.1} parent=1 // pred_check
      _
    $region11: #{tpu_custom_call.1} parent=1 // pred_check_branch
      %14 = sbr.rel (0) target = $region13
    $region12: #{tpu_custom_call.1} parent=1 // pred_region
      _
    $region13: #{tpu_custom_call.1} parent=1 // pred_fallthru
      _
    %v15 = vld [vmem:[%s1] sm:$0xff]
    %v16 = vld [vmem:[%s2] sm:$0xff]
    %v17 = vld [vmem:[%s0] sm:$0xff]
    %v18 = vld [vmem:[%s0 + $0x8] sm:$0xff]
    %20 = vset.pattern.permute.xlu0 0
    %21 = vperm.xlu0 %20, %v15
    %v22 = vpop.permute.xlu0 %21
    %v24 = vmax.f32 %v17, %v22
    %v25 = vmax.f32 %v18, %v22
    %27 = vset.pattern.permute.xlu0 0
    %28 = vperm.xlu0 %27, %v16
    %v29 = vpop.permute.xlu0 %28
    %v31 = vmin.f32 %v24, %v29
    %v32 = vmin.f32 %v25, %v29
    %33 = vst [vmem:[#allocation2] sm:$0xff] %v31
    %34 = vst [vmem:[#allocation2 + $0x8] sm:$0xff] %v32
    // Predicated region
    $region14: #{tpu_custom_call.1} parent=1 // pred_check
      _
    $region15: #{tpu_custom_call.1} parent=1 // pred_check_branch
      %36 = sbr.rel (0) target = $region17
    $region16: #{tpu_custom_call.1} parent=1 // pred_region
      %s38 = ssub.s32 256, 256
      %39 = vsyncadd [#allocation3], %s38
      %s41 = sshll.u32 [#allocation2], 4
      %s42 = int_to_ptr.vmem [resolvable:$true] %s41
      %44 = dma.vmem_to_hbm [thread:$0]  %s42, 256, %s3, [#allocation3]
    $region17: #{tpu_custom_call.1} parent=1 // pred_fallthru
      _
    // Predicated region
    $region18: #{tpu_custom_call.1} parent=1 // pred_check
      _
    $region19: #{tpu_custom_call.1} parent=1 // pred_check_branch
      %46 = sbr.rel (0) target = $region21
    $region20: #{tpu_custom_call.1} parent=1 // pred_region
      %47 = dma.done [#allocation3], 256
    $region21: #{tpu_custom_call.1} parent=1 // pred_fallthru
      _
    %48 = vsyncpa [#allocation3], 1

</llo_original>
